<compile_context>
chip_gen: v5e
topology: v5e:2x2
jax: 0.10.0
libtpu: 0.0.40
codegen_flags: <defaults>
</compile_context>

<pallas_src>
import math
import functools

import numpy as np
import jax
import jax.numpy as jnp
from jax import lax
from jax.experimental import pallas as pl
from jax.experimental.pallas import tpu as pltpu


def _round_up(v: int, m: int) -> int:
    return ((v + m - 1) // m) * m


def _fourier_kernel(x_ref, fmat_ref, bias_ref, out_ref):
    # x_ref:    (TILE, g)    f32 -- g packed logical rows per kernel row
    # fmat_ref: (g, g*d)     f32 -- fmat[j, j*d + m] = 2*pi/wavelength[m % (d//2)], else 0
    # bias_ref: (1, g*d)     f32 -- 0.0 on sin lanes, pi/2 on cos lanes
    # out_ref:  (TILE, g*d)  f32 -- packed [sin | cos] blocks, one per logical row
    #
    # Replication as a single MXU matmul: all contraction terms but one per
    # lane are exact zeros, so phase[:, j*d + m] == x[:, j] * freq[m].
    phase = jnp.dot(x_ref[...], fmat_ref[...],
                    preferred_element_type=jnp.float32,
                    precision=lax.Precision.HIGHEST)
    # cos(p) == sin(p + pi/2): one transcendental pass over the whole slab and
    # a single full-width (lane-dense, unmasked) store.
    out_ref[...] = jnp.sin(phase + bias_ref[...])


@functools.lru_cache(maxsize=None)
def _constants(d: int, g: int, lower: float, upper: float):
    """Cached host-built frequency-replication matrix and sin/cos phase bias."""
    half = d // 2
    wavelengths = np.logspace(math.log10(lower), math.log10(upper), half,
                              dtype=np.float64)
    freq = (2.0 * np.pi / wavelengths).astype(np.float32)       # (half,)
    freq_d = np.concatenate([freq, freq])                        # (d,) [sin|cos]
    fmat = np.zeros((g, g * d), dtype=np.float32)
    bias = np.zeros((1, g * d), dtype=np.float32)
    for j in range(g):
        fmat[j, j * d:(j + 1) * d] = freq_d
        bias[0, j * d + half:(j + 1) * d] = np.float32(np.pi / 2.0)
    return jnp.asarray(fmat), jnp.asarray(bias)


def _vmem_budget():
    """(vmem_limit_bytes, per-buffer block budget) sized per TPU generation."""
    try:
        cap = int(pltpu.get_tpu_info().vmem_capacity_bytes)
    except Exception:
        cap = 64 * 1024 * 1024                      # conservative (v7x-sized) fallback
    if cap >= 96 * 1024 * 1024:                     # v5e / v6e: 128 MiB physical VMEM
        return 64 * 1024 * 1024, 12 * 1024 * 1024
    return 32 * 1024 * 1024, 6 * 1024 * 1024        # v7x: 64 MiB physical VMEM


class FourierExpansion:
    """Pallas/TPU port of the PyTorch FourierExpansion module."""

    def __init__(self, lower: float, upper: float, assert_range: bool = True):
        self.lower = float(lower)
        self.upper = float(upper)
        self.assert_range = assert_range

    def _check_range(self, x):
        # Eager-only range check (mirrors the PyTorch assertion).  Only one
        # scalar bool crosses device->host; skipped entirely under jit tracing.
        # TODO(synk): no in-graph Python AssertionError equivalent (checkify
        #             could be added if an in-graph check is ever required).
        tracer_cls = getattr(jax.core, "Tracer", None)
        if tracer_cls is not None and isinstance(x, tracer_cls):
            return
        try:
            ax = jnp.abs(x)
            ok = jnp.all(((self.lower <= ax) & (ax <= self.upper)) | (x == 0))
            ok = bool(ok)
        except Exception:
            return
        if not ok:
            raise AssertionError(
                f"Input tensor outside range [{self.lower}, {self.upper}].")

    def __call__(self, x: jnp.ndarray, d: int) -> jnp.ndarray:
        if d % 2 != 0:
            raise ValueError("Dimensionality must be even.")
        if self.assert_range:
            self._check_range(x)

        # Pack g logical rows per kernel row: g*d is a multiple of 128 (lane
        # dense output, unmasked full-width stores) and g >= 8 so the MXU
        # contraction dimension is sublane aligned.
        g = max(128 // math.gcd(d, 128), 8)
        gd = g * d
        fmat, bias = _constants(d, g, self.lower, self.upper)

        orig_shape = x.shape
        n_total = int(math.prod(orig_shape)) if orig_shape else 1

        # Pad rows only to the 8-sublane / g-pack granularity; the last grid
        # block may be partial (Pallas masks its writeback), so aligned shapes
        # need no output copy at all.
        n_rows = _round_up(-(-n_total // g), 8)
        padded_total = n_rows * g

        x_flat = jnp.reshape(x, (-1,)).astype(jnp.float32)
        if padded_total != n_total:
            x_flat = jnp.pad(x_flat, (0, padded_total - n_total))
        x_packed = x_flat.reshape(n_rows, g)

        # Tile size: as large as the generation-aware VMEM budget allows
        # (counting the 128-lane padding of the (tile, g) x block), but small
        # enough that the grid has >= 2 steps so both v7x TensorCores get work.
        vmem_limit, block_budget = _vmem_budget()
        bytes_per_row = (gd + 128) * 4                    # out row + lane-padded x row
        tile_cap = min(8192, max(8, (block_budget // bytes_per_row) // 8 * 8))
        two_step_tile = _round_up(-(-n_rows // 2), 8)
        tile = max(8, min(tile_cap, two_step_tile))
        grid = (pl.cdiv(n_rows, tile),)

        cost = pl.CostEstimate(
            flops=int(n_rows * gd * (2 * g + 1)),         # MXU replication + bias add
            transcendentals=int(n_rows * gd),             # one sin per output element
            bytes_accessed=int(4 * (n_rows * g + n_rows * gd + g * gd + gd)),
        )

        out_packed = pl.pallas_call(
            _fourier_kernel,
            out_shape=jax.ShapeDtypeStruct((n_rows, gd), jnp.float32),
            grid=grid,
            in_specs=[
                pl.BlockSpec((tile, g), lambda i: (i, 0)),
                pl.BlockSpec((g, gd), lambda i: (0, 0)),
                pl.BlockSpec((1, gd), lambda i: (0, 0)),
            ],
            out_specs=pl.BlockSpec((tile, gd), lambda i: (i, 0)),
            compiler_params=pltpu.CompilerParams(
                dimension_semantics=("parallel",),
                vmem_limit_bytes=vmem_limit,
            ),
            cost_estimate=cost,
        )(x_packed, fmat, bias)

        # (n_rows, g*d) row-major == (n_rows*g, d) row-major: free unpack; the
        # slice (an output copy) is only taken when padding actually exists.
        out = out_packed.reshape(padded_total, d)
        if padded_total != n_total:
            out = out[:n_total]
        return out.reshape(*orig_shape, d)


def _reference(x, d, lower, upper):
    """float64 numpy reference mirroring the PyTorch module (cast to f32)."""
    x64 = np.asarray(x, dtype=np.float64)
    wavelengths = np.logspace(math.log10(lower), math.log10(upper), d // 2,
                              dtype=np.float64)
    phase = x64[..., None] * (2.0 * np.pi / wavelengths)
    return np.concatenate([np.sin(phase), np.cos(phase)], axis=-1).astype(np.float32)


if __name__ == "__main__":
    k1, k2 = jax.random.split(jax.random.PRNGKey(0))

    lower, upper = 1.0, 100.0
    d = 32
    batch, channels, n = 2, 4, 16

    x = jax.random.uniform(k1, (batch, channels, n), minval=lower, maxval=upper,
                           dtype=jnp.float32)
    expansion = FourierExpansion(lower, upper, assert_range=True)

    out = jax.block_until_ready(expansion(x, d))
    assert out.shape == (batch, channels, n, d), out.shape
    assert out.dtype == jnp.float32, out.dtype

    # Kernel runs in f32 (max |phase| ~ 2*pi*upper/lower ~ 6.3e2), so the
    # achievable accuracy vs. the f64 reference is a few f32 ulps of |phase|
    # (~1e-4); 5e-4 still catches any layout / frequency / sin-cos-swap bug.
    ref = _reference(x, d, lower, upper)
    err = float(np.max(np.abs(np.asarray(out) - ref)))
    assert err < 5e-4, err

    # Works under jit (range check is skipped while tracing) and matches eager.
    out_jit = jax.block_until_ready(jax.jit(lambda t: expansion(t, d))(x))
    assert jnp.allclose(out_jit, out, atol=1e-6, rtol=0.0), \
        float(jnp.max(jnp.abs(out_jit - out)))

    # Ragged size exercising the pack/pad/slice path (partial last grid block).
    x2 = jax.random.uniform(k2, (3, 7), minval=lower, maxval=upper,
                            dtype=jnp.float32)
    out2 = jax.block_until_ready(expansion(x2, d))
    ref2 = _reference(x2, d, lower, upper)
    assert out2.shape == (3, 7, d), out2.shape
    err2 = float(np.max(np.abs(np.asarray(out2) - ref2)))
    assert err2 < 5e-4, err2

    print("KERNEL_OK")
</pallas_src>

<mosaic_0001>
module attributes {stable_mosaic.version = 11 : i64} {
  func.func @_fourier_kernel(%arg0: i32, %arg1: memref<8x8xf32, #tpu.memory_space<vmem>>, %arg2: memref<8x256xf32, #tpu.memory_space<vmem>>, %arg3: memref<1x256xf32, #tpu.memory_space<vmem>>, %arg4: memref<8x256xf32, #tpu.memory_space<vmem>>) attributes {dimension_semantics = [#tpu.dimension_semantics<parallel>], iteration_bounds = array<i64: 2>, scalar_prefetch = 0 : i64, scratch_operands = 0 : i64, tpu.core_type = #tpu.core_type<tc>, window_params = [{transform_indices = @transform_0, window_bounds = array<i64: 8, 8>}, {pipeline_mode = #tpu.pipeline_mode<synchronous>, transform_indices = @transform_1, window_bounds = array<i64: 8, 256>}, {pipeline_mode = #tpu.pipeline_mode<synchronous>, transform_indices = @transform_2, window_bounds = array<i64: 1, 256>}, {transform_indices = @transform_3, window_bounds = array<i64: 8, 256>}]} {
    %c0 = arith.constant 0 : index
    %c0_0 = arith.constant 0 : index
    %0 = vector.load %arg1[%c0, %c0_0] : memref<8x8xf32, #tpu.memory_space<vmem>>, vector<8x8xf32>
    %c0_1 = arith.constant 0 : index
    %c0_2 = arith.constant 0 : index
    %1 = vector.load %arg2[%c0_1, %c0_2] : memref<8x256xf32, #tpu.memory_space<vmem>>, vector<8x256xf32>
    %cst = arith.constant dense<0.000000e+00> : vector<8x256xf32>
    %2 = tpu.matmul %0, %1, %cst {dimension_numbers = #tpu.dot_dimension_numbers<[1], [0], [0], [1], [0, 0, 1, 1], [], []>, precision = #tpu.contract_precision<fp32>} : vector<8x8xf32>, vector<8x256xf32>, vector<8x256xf32> -> vector<8x256xf32>
    %c0_3 = arith.constant 0 : index
    %c0_4 = arith.constant 0 : index
    %3 = vector.load %arg3[%c0_3, %c0_4] : memref<1x256xf32, #tpu.memory_space<vmem>>, vector<1x256xf32>
    %4 = vector.broadcast %3 : vector<1x256xf32> to vector<8x256xf32>
    %5 = arith.addf %2, %4 : vector<8x256xf32>
    %6 = math.sin %5 : vector<8x256xf32>
    %c0_5 = arith.constant 0 : index
    %c0_6 = arith.constant 0 : index
    %7 = vector.load %arg4[%c0_5, %c0_6] : memref<8x256xf32, #tpu.memory_space<vmem>>, vector<8x256xf32>
    tpu.vector_store %arg4[%c0_5, %c0_6], %6 {strides = array<i32>} : memref<8x256xf32, #tpu.memory_space<vmem>>, vector<8x256xf32>,
    return
  }
  func.func @transform_0(%arg0: i32) -> (i32, i32) {
    %c0_i32 = arith.constant 0 : i32
    %c0_i32_0 = arith.constant 0 : i32
    return %arg0, %c0_i32 : i32, i32
  }
  func.func @transform_1(%arg0: i32) -> (i32, i32) {
    %c0_i32 = arith.constant 0 : i32
    %c0_i32_0 = arith.constant 0 : i32
    %c0_i32_1 = arith.constant 0 : i32
    return %c0_i32, %c0_i32_0 : i32, i32
  }
  func.func @transform_2(%arg0: i32) -> (i32, i32) {
    %c0_i32 = arith.constant 0 : i32
    %c0_i32_0 = arith.constant 0 : i32
    %c0_i32_1 = arith.constant 0 : i32
    return %c0_i32, %c0_i32_0 : i32, i32
  }
  func.func @transform_3(%arg0: i32) -> (i32, i32) {
    %c0_i32 = arith.constant 0 : i32
    %c0_i32_0 = arith.constant 0 : i32
    return %arg0, %c0_i32 : i32, i32
  }
}

</mosaic_0001>

<llo_original>
// kernel: tpu_custom_call.1
$region0: #{tpu_custom_call.1}
  #allocation0 [shape = 'u32[]', space=smem, size = 0x4, offset = 0x4, fixed_abs, tag = 'smem constant byte address 0x4 - core index']
  #allocation1 [shape = 'u32[72,128]{1,0:T(1,128)}', space=vmem, size = 0x9000, scoped, tag = 'internal scratch']
  %s0 = inlined_call_operand.vmem [shape: f32[16,8], index: 0, kind: input, shape index: {}]
  %s1 = inlined_call_operand.vmem [shape: f32[8,256], index: 1, kind: input, shape index: {}]
  %s2 = inlined_call_operand.vmem [shape: f32[1,256], index: 2, kind: input, shape index: {}]
  %s3 = inlined_call_operand.hbm [shape: f32[16,256], index: 3, kind: output, shape index: {}]
  %s4 = sld [smem:[#allocation0]]
  $region45: #{tpu_custom_call.1} parent=0
    _
  %s6 = ssub.s32 1, %s4
  %s7 = scalar_select 0, %s6, %s4
  $region1: #{tpu_custom_call.1} parent=0
    #allocation2 [shape = 'u8[16384]{0}', space=vmem, size = 0x4000, scoped, tag = 'output window, operand 0']
    #allocation3 [shape = 's32[2]{0}', space=sflag, size = 0x8, scoped, tag = 'scoped memory for tpu_custom_call.1']
    %8 = vsyncpa [#allocation3], 0
    %s9 = scalar_lea.sflag [#allocation3], 1
    %10 = vsyncpa %s9, 0
    loop: start=0, step=1, limit=4
    $region2: #{tpu_custom_call.1} parent=1 // loop_pre_header
      _
    $region3: #{tpu_custom_call.1} parent=1 // loop_header
      %s12 = sphi 0, %s16
      %p13 = scmp.ge.s32.totalorder %s12, 4
      %s22 = sphi 0, %s24
      %s25 = sphi 0, %s22
      %s26 = sphi 0, %s25
      %s42 = sphi 0, %s26
      %s46 = sphi 0, %s46
      %s48 = sphi 0, %s46
      %s49 = sphi 0, %s48
      %s63 = sphi 0, %s49
      %s67 = sphi 0, %s67
      %s69 = sphi 0, %s67
      %s70 = sphi 0, %s69
      %s84 = sphi 0, %s70
      %s90 = sphi 0, %s92
      %s93 = sphi 0, %s90
      %s94 = sphi 0, %s93
      %s110 = sphi 0, %s94
    $region4: #{tpu_custom_call.1} parent=1 // loop_header_branch
      %15 = sbr.rel (%p13) target = $region8
    $region5: #{tpu_custom_call.1} parent=1 // loop_body
      %s17 = ssub.s32 %s12, 1
      %s18 = ssub.s32 %s12, 2
      %s19 = sadd.s32 %s12, 1
      %s20 = ssub.s32 %s12, %s19
      %p21 = scmp.eq.s32.totalorder %s20, 0
      %s23 = sadd.s32 %s22, 1
      %s24 = scalar_select %p21, %s22, %s23
      %p27 = pneg %p21
      %p28 = scmp.eq.s32.totalorder %s12, 1
      %p29 = por %p27, %p28
      %p30 = scmp.ne.s32.totalorder %s22, %s25
      %p31 = scmp.eq.s32.totalorder %s12, 0
      %p32 = por %p30, %p31
      %p33 = scmp.ne.s32.totalorder %s22, %s25
      %p34 = scmp.eq.s32.totalorder %s17, 1
      %p35 = por %p33, %p34
      %p36 = scmp.ne.s32.totalorder %s25, %s26
      %p37 = scmp.eq.s32.totalorder %s17, 0
      %p38 = por %p36, %p37
      %p39 = scmp.ne.s32.totalorder %s25, %s26
      %p40 = scmp.eq.s32.totalorder %s18, 1
      %p41 = por %p39, %p40
      %p43 = scmp.ne.s32.totalorder %s26, %s42
      %p44 = scmp.eq.s32.totalorder %s18, 0
      %p45 = por %p43, %p44
      %s47 = sadd.s32 %s46, 1
      %p50 = scmp.eq.s32.totalorder %s12, 1
      %p51 = scmp.ne.s32.totalorder %s46, %s48
      %p52 = scmp.eq.s32.totalorder %s12, 0
      %p53 = por %p51, %p52
      %p54 = scmp.ne.s32.totalorder %s46, %s48
      %p55 = scmp.eq.s32.totalorder %s17, 1
      %p56 = por %p54, %p55
      %p57 = scmp.ne.s32.totalorder %s48, %s49
      %p58 = scmp.eq.s32.totalorder %s17, 0
      %p59 = por %p57, %p58
      %p60 = scmp.ne.s32.totalorder %s48, %s49
      %p61 = scmp.eq.s32.totalorder %s18, 1
      %p62 = por %p60, %p61
      %p64 = scmp.ne.s32.totalorder %s49, %s63
      %p65 = scmp.eq.s32.totalorder %s18, 0
      %p66 = por %p64, %p65
      %s68 = sadd.s32 %s67, 1
      %p71 = scmp.eq.s32.totalorder %s12, 1
      %p72 = scmp.ne.s32.totalorder %s67, %s69
      %p73 = scmp.eq.s32.totalorder %s12, 0
      %p74 = por %p72, %p73
      %p75 = scmp.ne.s32.totalorder %s67, %s69
      %p76 = scmp.eq.s32.totalorder %s17, 1
      %p77 = por %p75, %p76
      %p78 = scmp.ne.s32.totalorder %s69, %s70
      %p79 = scmp.eq.s32.totalorder %s17, 0
      %p80 = por %p78, %p79
      %p81 = scmp.ne.s32.totalorder %s69, %s70
      %p82 = scmp.eq.s32.totalorder %s18, 1
      %p83 = por %p81, %p82
      %p85 = scmp.ne.s32.totalorder %s70, %s84
      %p86 = scmp.eq.s32.totalorder %s18, 0
      %p87 = por %p85, %p86
      %s88 = ssub.s32 %s12, %s19
      %p89 = scmp.eq.s32.totalorder %s88, 0
      %s91 = sadd.s32 %s90, 1
      %s92 = scalar_select %p89, %s90, %s91
      %p95 = pneg %p89
      %p96 = scmp.eq.s32.totalorder %s12, 1
      %p97 = por %p95, %p96
      %p98 = scmp.ne.s32.totalorder %s90, %s93
      %p99 = scmp.eq.s32.totalorder %s12, 0
      %p100 = por %p98, %p99
      %p101 = scmp.ne.s32.totalorder %s90, %s93
      %p102 = scmp.eq.s32.totalorder %s17, 1
      %p103 = por %p101, %p102
      %p104 = scmp.ne.s32.totalorder %s93, %s94
      %p105 = scmp.eq.s32.totalorder %s17, 0
      %p106 = por %p104, %p105
      %p107 = scmp.ne.s32.totalorder %s93, %s94
      %p108 = scmp.eq.s32.totalorder %s18, 1
      %p109 = por %p107, %p108
      %p111 = scmp.ne.s32.totalorder %s94, %s110
      %p112 = scmp.eq.s32.totalorder %s18, 0
      %p113 = por %p111, %p112
      %p114 = scmp.le.s32.totalorder 1, %s12
      %p115 = scmp.lt.s32.totalorder %s12, 3
      %p116 = pnand %p114, %p115
      %p117 = pneg %p116
      // Predicated region
      $region9: #{tpu_custom_call.1} parent=5 // pred_check
        _
      $region10: #{tpu_custom_call.1} parent=5 // pred_check_branch
        %119 = sbr.rel (%p116) target = $region12
      $region11: #{tpu_custom_call.1} parent=5 // pred_region
        %s120 = ssub.s32 %s12, 1
        // Predicated region
        $region13: #{tpu_custom_call.1} parent=11 // pred_check
          %p121 = pneg %p59
        $region14: #{tpu_custom_call.1} parent=11 // pred_check_branch
          %123 = sbr.rel (%p121) target = $region16
        $region15: #{tpu_custom_call.1} parent=11 // pred_region
          _
        $region16: #{tpu_custom_call.1} parent=11 // pred_fallthru
          _
        // Predicated region
        $region17: #{tpu_custom_call.1} parent=11 // pred_check
          %p124 = pneg %p80
        $region18: #{tpu_custom_call.1} parent=11 // pred_check_branch
          %126 = sbr.rel (%p124) target = $region20
        $region19: #{tpu_custom_call.1} parent=11 // pred_region
          _
        $region20: #{tpu_custom_call.1} parent=11 // pred_fallthru
          _
      $region12: #{tpu_custom_call.1} parent=5 // pred_fallthru
        _
      %p127 = scmp.lt.s32.totalorder %s12, 2
      // Predicated region
      $region21: #{tpu_custom_call.1} parent=5 // pred_check
        %p128 = pneg %p127
      $region22: #{tpu_custom_call.1} parent=5 // pred_check_branch
        %130 = sbr.rel (%p128) target = $region24
      $region23: #{tpu_custom_call.1} parent=5 // pred_region
        // Predicated region
        $region25: #{tpu_custom_call.1} parent=23 // pred_check
          %p131 = pneg %p32
        $region26: #{tpu_custom_call.1} parent=23 // pred_check_branch
          %133 = sbr.rel (%p131) target = $region28
        $region27: #{tpu_custom_call.1} parent=23 // pred_region
          %p134 = scmp.lt.s32.totalorder %s12, 1
          %s135 = scalar_select %p134, %s12, 1
          %s136 = smul.addr %s135, 8
          %s137 = scalar_lea.vmem %s0, %s136
        $region28: #{tpu_custom_call.1} parent=23 // pred_fallthru
          _
      $region24: #{tpu_custom_call.1} parent=5 // pred_fallthru
        _
      %p138 = scmp.le.s32.totalorder 1, %s12
      %p139 = scmp.lt.s32.totalorder %s12, 3
      %p140 = pnand %p138, %p139
      %p141 = pneg %p140
      // Predicated region
      $region29: #{tpu_custom_call.1} parent=5 // pred_check
        _
      $region30: #{tpu_custom_call.1} parent=5 // pred_check_branch
        %143 = sbr.rel (%p140) target = $region32
      $region31: #{tpu_custom_call.1} parent=5 // pred_region
        %s144 = ssub.s32 %s12, 1
        %p145 = scmp.lt.s32.totalorder %s17, 1
        %s146 = scalar_select %p145, %s17, 1
        %s147 = smul.addr %s146, 8
        %s148 = scalar_lea.vmem %s0, %s147
        %p149 = pneg %p38
        %p150 = pneg %p35
        %p151 = pneg %p59
        %p152 = pneg %p56
        %p153 = pneg %p80
        %p154 = pneg %p77
        %p155 = pneg %p106
        %p156 = pneg %p103
        %s157 = sand.u32 %s93, 1
        %s158 = scalar_lea.sflag [#allocation3], %s157
        %s159 = sand.u32 %s93, 1
        %s160 = smul.addr %s159, 16
        %s161 = scalar_lea.vmem [#allocation2], %s160
        %p162 = scmp.lt.s32.totalorder %s17, 1
        %s163 = scalar_select %p162, %s17, 1
        %s164 = smul.addr %s163, 8
        %s165 = scalar_lea.vmem %s0, %s164
        %v166 = vld [vmem:[%s165] sm:$0xff]
        %v167 = vld [vmem:[%s1] sm:$0xff]
        %v168 = vld [vmem:[%s1 + $0x8] sm:$0xff]
        %v169 = vld [vmem:[%s2] sm:$0x3]
        %v171 = vperm.slane %v169, 0
        %v172 = vperm.slane %v169, 1
        %vm175 = vcmask 64512
        %v177 = vsel %vm175, %v166, 0
        %179 = vmatpush.msra.mxu0 0.0
        %180 = vmatpush.msra.mxu0 0.0
        %181 = vmatpush.msra.mxu0 0.0
        %182 = vmatpush.msra.mxu0 0.0
        %183 = vmatpush.msra.mxu0 0.0
        %184 = vmatpush.msra.mxu0 0.0
        %185 = vmatpush.msra.mxu0 0.0
        %186 = vmatpush.msra.mxu0 0.0
        %187 = vmatpush.msra.mxu0 0.0
        %188 = vmatpush.msra.mxu0 0.0
        %189 = vmatpush.msra.mxu0 0.0
        %190 = vmatpush.msra.mxu0 0.0
        %191 = vmatpush.msra.mxu0 0.0
        %192 = vmatpush.msra.mxu0 0.0
        %193 = vmatpush.msra.mxu0 0.0
        %v194 = vand.u32 %v167, 4294901760
        %195 = vmatpush.msra.mxu0 %v194
        %v196 = vand.u32 %v177, 4294901760
        %v197 = vsub.f32 %v177, %v196
        %v198 = vand.u32 %v197, 4294901760
        %v199 = vsub.f32 %v197, %v198
        %v200 = vand.u32 %v199, 4294901760
        %201 = vmatmul.f32.gmra.mxu0 %v200
        %v202 = vpop.f32.mrf.mxu0
        %v203 = vadd.f32 %v171, %v202
        %204 = vdwg.mxu0
        %205 = vmatpush.msra.mxu0 0.0
        %206 = vmatpush.msra.mxu0 0.0
        %207 = vmatpush.msra.mxu0 0.0
        %208 = vmatpush.msra.mxu0 0.0
        %209 = vmatpush.msra.mxu0 0.0
        %210 = vmatpush.msra.mxu0 0.0
        %211 = vmatpush.msra.mxu0 0.0
        %212 = vmatpush.msra.mxu0 0.0
        %213 = vmatpush.msra.mxu0 0.0
        %214 = vmatpush.msra.mxu0 0.0
        %215 = vmatpush.msra.mxu0 0.0
        %216 = vmatpush.msra.mxu0 0.0
        %217 = vmatpush.msra.mxu0 0.0
        %218 = vmatpush.msra.mxu0 0.0
        %219 = vmatpush.msra.mxu0 0.0
        %v220 = vand.u32 %v167, 4294901760
        %v221 = vsub.f32 %v167, %v220
        %v222 = vand.u32 %v221, 4294901760
        %v223 = vsub.f32 %v221, %v222
        %v224 = vand.u32 %v223, 4294901760
        %225 = vmatpush.msra.mxu0 %v224
        %v226 = vand.u32 %v177, 4294901760
        %227 = vmatmul.f32.gmra.mxu0 %v226
        %v228 = vpop.f32.mrf.mxu0
        %v229 = vadd.f32 %v203, %v228
        %230 = vdwg.mxu0
        %231 = vmatpush.msra.mxu0 0.0
        %232 = vmatpush.msra.mxu0 0.0
        %233 = vmatpush.msra.mxu0 0.0
        %234 = vmatpush.msra.mxu0 0.0
        %235 = vmatpush.msra.mxu0 0.0
        %236 = vmatpush.msra.mxu0 0.0
        %237 = vmatpush.msra.mxu0 0.0
        %238 = vmatpush.msra.mxu0 0.0
        %239 = vmatpush.msra.mxu0 0.0
        %240 = vmatpush.msra.mxu0 0.0
        %241 = vmatpush.msra.mxu0 0.0
        %242 = vmatpush.msra.mxu0 0.0
        %243 = vmatpush.msra.mxu0 0.0
        %244 = vmatpush.msra.mxu0 0.0
        %245 = vmatpush.msra.mxu0 0.0
        %v246 = vand.u32 %v167, 4294901760
        %v247 = vsub.f32 %v167, %v246
        %248 = vmatpush.msra.mxu0 %v247
        %v249 = vand.u32 %v177, 4294901760
        %v250 = vsub.f32 %v177, %v249
        %251 = vmatmul.f32.gmra.mxu0 %v250
        %v252 = vpop.f32.mrf.mxu0
        %v253 = vadd.f32 %v229, %v252
        %254 = vdwg.mxu0
        %255 = vmatpush.msra.mxu0 0.0
        %256 = vmatpush.msra.mxu0 0.0
        %257 = vmatpush.msra.mxu0 0.0
        %258 = vmatpush.msra.mxu0 0.0
        %259 = vmatpush.msra.mxu0 0.0
        %260 = vmatpush.msra.mxu0 0.0
        %261 = vmatpush.msra.mxu0 0.0
        %262 = vmatpush.msra.mxu0 0.0
        %263 = vmatpush.msra.mxu0 0.0
        %264 = vmatpush.msra.mxu0 0.0
        %265 = vmatpush.msra.mxu0 0.0
        %266 = vmatpush.msra.mxu0 0.0
        %267 = vmatpush.msra.mxu0 0.0
        %268 = vmatpush.msra.mxu0 0.0
        %269 = vmatpush.msra.mxu0 0.0
        %v270 = vand.u32 %v167, 4294901760
        %271 = vmatpush.msra.mxu0 %v270
        %v272 = vand.u32 %v177, 4294901760
        %v273 = vsub.f32 %v177, %v272
        %v274 = vand.u32 %v273, 4294901760
        %275 = vmatmul.f32.gmra.mxu0 %v274
        %v276 = vpop.f32.mrf.mxu0
        %v277 = vadd.f32 %v253, %v276
        %278 = vdwg.mxu0
        %279 = vmatpush.msra.mxu0 0.0
        %280 = vmatpush.msra.mxu0 0.0
        %281 = vmatpush.msra.mxu0 0.0
        %282 = vmatpush.msra.mxu0 0.0
        %283 = vmatpush.msra.mxu0 0.0
        %284 = vmatpush.msra.mxu0 0.0
        %285 = vmatpush.msra.mxu0 0.0
        %286 = vmatpush.msra.mxu0 0.0
        %287 = vmatpush.msra.mxu0 0.0
        %288 = vmatpush.msra.mxu0 0.0
        %289 = vmatpush.msra.mxu0 0.0
        %290 = vmatpush.msra.mxu0 0.0
        %291 = vmatpush.msra.mxu0 0.0
        %292 = vmatpush.msra.mxu0 0.0
        %293 = vmatpush.msra.mxu0 0.0
        %v294 = vand.u32 %v167, 4294901760
        %v295 = vsub.f32 %v167, %v294
        %v296 = vand.u32 %v295, 4294901760
        %297 = vmatpush.msra.mxu0 %v296
        %v298 = vand.u32 %v177, 4294901760
        %299 = vmatmul.f32.gmra.mxu0 %v298
        %v300 = vpop.f32.mrf.mxu0
        %v301 = vadd.f32 %v277, %v300
        %302 = vdwg.mxu0
        %303 = vmatpush.msra.mxu0 0.0
        %304 = vmatpush.msra.mxu0 0.0
        %305 = vmatpush.msra.mxu0 0.0
        %306 = vmatpush.msra.mxu0 0.0
        %307 = vmatpush.msra.mxu0 0.0
        %308 = vmatpush.msra.mxu0 0.0
        %309 = vmatpush.msra.mxu0 0.0
        %310 = vmatpush.msra.mxu0 0.0
        %311 = vmatpush.msra.mxu0 0.0
        %312 = vmatpush.msra.mxu0 0.0
        %313 = vmatpush.msra.mxu0 0.0
        %314 = vmatpush.msra.mxu0 0.0
        %315 = vmatpush.msra.mxu0 0.0
        %316 = vmatpush.msra.mxu0 0.0
        %317 = vmatpush.msra.mxu0 0.0
        %v318 = vand.u32 %v167, 4294901760
        %319 = vmatpush.msra.mxu0 %v318
        %v320 = vand.u32 %v177, 4294901760
        %321 = vmatmul.f32.gmra.mxu0 %v320
        %v322 = vpop.f32.mrf.mxu0
        %v323 = vadd.f32 %v301, %v322
        %324 = vdwg.mxu0
        %325 = vmatpush.msra.mxu0 0.0
        %326 = vmatpush.msra.mxu0 0.0
        %327 = vmatpush.msra.mxu0 0.0
        %328 = vmatpush.msra.mxu0 0.0
        %329 = vmatpush.msra.mxu0 0.0
        %330 = vmatpush.msra.mxu0 0.0
        %331 = vmatpush.msra.mxu0 0.0
        %332 = vmatpush.msra.mxu0 0.0
        %333 = vmatpush.msra.mxu0 0.0
        %334 = vmatpush.msra.mxu0 0.0
        %335 = vmatpush.msra.mxu0 0.0
        %336 = vmatpush.msra.mxu0 0.0
        %337 = vmatpush.msra.mxu0 0.0
        %338 = vmatpush.msra.mxu0 0.0
        %339 = vmatpush.msra.mxu0 0.0
        %v340 = vand.u32 %v168, 4294901760
        %341 = vmatpush.msra.mxu0 %v340
        %v342 = vand.u32 %v177, 4294901760
        %v343 = vsub.f32 %v177, %v342
        %v344 = vand.u32 %v343, 4294901760
        %v345 = vsub.f32 %v343, %v344
        %v346 = vand.u32 %v345, 4294901760
        %347 = vmatmul.f32.gmra.mxu0 %v346
        %v348 = vpop.f32.mrf.mxu0
        %v349 = vadd.f32 %v172, %v348
        %350 = vdwg.mxu0
        %351 = vmatpush.msra.mxu0 0.0
        %352 = vmatpush.msra.mxu0 0.0
        %353 = vmatpush.msra.mxu0 0.0
        %354 = vmatpush.msra.mxu0 0.0
        %355 = vmatpush.msra.mxu0 0.0
        %356 = vmatpush.msra.mxu0 0.0
        %357 = vmatpush.msra.mxu0 0.0
        %358 = vmatpush.msra.mxu0 0.0
        %359 = vmatpush.msra.mxu0 0.0
        %360 = vmatpush.msra.mxu0 0.0
        %361 = vmatpush.msra.mxu0 0.0
        %362 = vmatpush.msra.mxu0 0.0
        %363 = vmatpush.msra.mxu0 0.0
        %364 = vmatpush.msra.mxu0 0.0
        %365 = vmatpush.msra.mxu0 0.0
        %v366 = vand.u32 %v168, 4294901760
        %v367 = vsub.f32 %v168, %v366
        %v368 = vand.u32 %v367, 4294901760
        %v369 = vsub.f32 %v367, %v368
        %v370 = vand.u32 %v369, 4294901760
        %371 = vmatpush.msra.mxu0 %v370
        %v372 = vand.u32 %v177, 4294901760
        %373 = vmatmul.f32.gmra.mxu0 %v372
        %v374 = vpop.f32.mrf.mxu0
        %v375 = vadd.f32 %v349, %v374
        %376 = vdwg.mxu0
        %377 = vmatpush.msra.mxu0 0.0
        %378 = vmatpush.msra.mxu0 0.0
        %379 = vmatpush.msra.mxu0 0.0
        %380 = vmatpush.msra.mxu0 0.0
        %381 = vmatpush.msra.mxu0 0.0
        %382 = vmatpush.msra.mxu0 0.0
        %383 = vmatpush.msra.mxu0 0.0
        %384 = vmatpush.msra.mxu0 0.0
        %385 = vmatpush.msra.mxu0 0.0
        %386 = vmatpush.msra.mxu0 0.0
        %387 = vmatpush.msra.mxu0 0.0
        %388 = vmatpush.msra.mxu0 0.0
        %389 = vmatpush.msra.mxu0 0.0
        %390 = vmatpush.msra.mxu0 0.0
        %391 = vmatpush.msra.mxu0 0.0
        %v392 = vand.u32 %v168, 4294901760
        %v393 = vsub.f32 %v168, %v392
        %394 = vmatpush.msra.mxu0 %v393
        %v395 = vand.u32 %v177, 4294901760
        %v396 = vsub.f32 %v177, %v395
        %397 = vmatmul.f32.gmra.mxu0 %v396
        %v398 = vpop.f32.mrf.mxu0
        %v399 = vadd.f32 %v375, %v398
        %400 = vdwg.mxu0
        %401 = vmatpush.msra.mxu0 0.0
        %402 = vmatpush.msra.mxu0 0.0
        %403 = vmatpush.msra.mxu0 0.0
        %404 = vmatpush.msra.mxu0 0.0
        %405 = vmatpush.msra.mxu0 0.0
        %406 = vmatpush.msra.mxu0 0.0
        %407 = vmatpush.msra.mxu0 0.0
        %408 = vmatpush.msra.mxu0 0.0
        %409 = vmatpush.msra.mxu0 0.0
        %410 = vmatpush.msra.mxu0 0.0
        %411 = vmatpush.msra.mxu0 0.0
        %412 = vmatpush.msra.mxu0 0.0
        %413 = vmatpush.msra.mxu0 0.0
        %414 = vmatpush.msra.mxu0 0.0
        %415 = vmatpush.msra.mxu0 0.0
        %v416 = vand.u32 %v168, 4294901760
        %417 = vmatpush.msra.mxu0 %v416
        %v418 = vand.u32 %v177, 4294901760
        %v419 = vsub.f32 %v177, %v418
        %v420 = vand.u32 %v419, 4294901760
        %421 = vmatmul.f32.gmra.mxu0 %v420
        %v422 = vpop.f32.mrf.mxu0
        %v423 = vadd.f32 %v399, %v422
        %424 = vdwg.mxu0
        %425 = vmatpush.msra.mxu0 0.0
        %426 = vmatpush.msra.mxu0 0.0
        %427 = vmatpush.msra.mxu0 0.0
        %428 = vmatpush.msra.mxu0 0.0
        %429 = vmatpush.msra.mxu0 0.0
        %430 = vmatpush.msra.mxu0 0.0
        %431 = vmatpush.msra.mxu0 0.0
        %432 = vmatpush.msra.mxu0 0.0
        %433 = vmatpush.msra.mxu0 0.0
        %434 = vmatpush.msra.mxu0 0.0
        %435 = vmatpush.msra.mxu0 0.0
        %436 = vmatpush.msra.mxu0 0.0
        %437 = vmatpush.msra.mxu0 0.0
        %438 = vmatpush.msra.mxu0 0.0
        %439 = vmatpush.msra.mxu0 0.0
        %v440 = vand.u32 %v168, 4294901760
        %v441 = vsub.f32 %v168, %v440
        %v442 = vand.u32 %v441, 4294901760
        %443 = vmatpush.msra.mxu0 %v442
        %v444 = vand.u32 %v177, 4294901760
        %445 = vmatmul.f32.gmra.mxu0 %v444
        %v446 = vpop.f32.mrf.mxu0
        %v447 = vadd.f32 %v423, %v446
        %448 = vdwg.mxu0
        %449 = vmatpush.msra.mxu0 0.0
        %450 = vmatpush.msra.mxu0 0.0
        %451 = vmatpush.msra.mxu0 0.0
        %452 = vmatpush.msra.mxu0 0.0
        %453 = vmatpush.msra.mxu0 0.0
        %454 = vmatpush.msra.mxu0 0.0
        %455 = vmatpush.msra.mxu0 0.0
        %456 = vmatpush.msra.mxu0 0.0
        %457 = vmatpush.msra.mxu0 0.0
        %458 = vmatpush.msra.mxu0 0.0
        %459 = vmatpush.msra.mxu0 0.0
        %460 = vmatpush.msra.mxu0 0.0
        %461 = vmatpush.msra.mxu0 0.0
        %462 = vmatpush.msra.mxu0 0.0
        %463 = vmatpush.msra.mxu0 0.0
        %v464 = vand.u32 %v168, 4294901760
        %465 = vmatpush.msra.mxu0 %v464
        %v466 = vand.u32 %v177, 4294901760
        %467 = vmatmul.f32.gmra.mxu0 %v466
        %v468 = vpop.f32.mrf.mxu0
        %v469 = vadd.f32 %v447, %v468
        %470 = vdwg.mxu0
        %v471 = vand.u32 2147483647, %v323
        %vm472 = vcmp.le.f32.partialorder %v471, 0.7853982
        %vm473 = vcmp.lt.s32.totalorder %v323, 0
        %v474 = vand.u32 %v323, 2139095040
        %v475 = vshrl.u32 %v474, 23
        %v476 = vsub.s32 %v475, 127
        %v477 = vand.u32 2147483647, %v323
        %v478 = vand.u32 %v477, 8388607
        %v479 = vor.u32 %v478, 8388608
        %v480 = vsub.s32 0, %v479
        %v481 = vadd.s32 %v476, 1
        %vm482 = vcmp.gt.s32.totalorder %v481, 0
        %v483 = vsel %vm482, %v481, 0
        %v484 = vshrl.u32 %v483, 5
        %v485 = vand.u32 %v483, 31
        %v486 = vsub.s32 32, %v485
        %v487 = vshrl.u32 683565275, %v486
        %v488 = vshll.u32 683565275, %v485
        %v489 = vshrl.u32 2475754826, %v486
        %v490 = vor.u32 %v488, %v489
        %v491 = vshll.u32 2475754826, %v485
        %v492 = vshrl.u32 2131351028, %v486
        %v493 = vor.u32 %v491, %v492
        %v494 = vshll.u32 2131351028, %v485
        %v495 = vshrl.u32 2102212464, %v486
        %v496 = vor.u32 %v494, %v495
        %v497 = vshll.u32 2102212464, %v485
        %v498 = vshrl.u32 920167782, %v486
        %v499 = vor.u32 %v497, %v498
        %v500 = vshll.u32 920167782, %v485
        %v501 = vshrl.u32 1326507024, %v486
        %v502 = vor.u32 %v500, %v501
        %vm503 = vcmp.lt.s32.totalorder %v484, 1
        %vm504 = vcmp.lt.s32.totalorder %v484, 2
        %vm505 = vcmp.lt.s32.totalorder %v484, 3
        %vm506 = vcmp.lt.s32.totalorder %v484, 4
        %v507 = vsel %vm503, %v487, %v490
        %v508 = vsel %vm506, %v496, 2102212464
        %v509 = vsel %vm505, %v493, %v508
        %v510 = vsel %vm504, %v507, %v509
        %v511 = vsel %vm503, %v490, %v493
        %v512 = vsel %vm506, %v499, 920167782
        %v513 = vsel %vm505, %v496, %v512
        %v514 = vsel %vm504, %v511, %v513
        %v515 = vsel %vm503, %v493, %v496
        %v516 = vsel %vm506, %v502, 1326507024
        %v517 = vsel %vm505, %v499, %v516
        %v518 = vsel %vm504, %v515, %v517
        %v519 = vshll.u32 %v479, 8
        %v520 = vand.u32 %v519, 65535
        %v521 = vshrl.u32 %v519, 16
        %v522 = vand.u32 %v518, 65535
        %v523 = vshrl.u32 %v518, 16
        %v524 = vmul.u32 %v520, %v522
        %v525 = vmul.u32 %v520, %v523
        %v526 = vmul.u32 %v521, %v522
        %v527 = vmul.u32 %v521, %v523
        %v528 = vshll.u32 %v525, 16
        %v529 = vshrl.u32 %v525, 16
        %v530 = vshll.u32 %v526, 16
        %v531 = vshrl.u32 %v526, 16
        %vm532 = vc.u32 %v524, %v528
        %v533 = vsel %vm532, 1, 0
        %v534 = vadd.s32 %v524, %v528
        %v535 = vadd.s32 %v527, %v533
        %vm536 = vc.u32 %v534, %v530
        %v537 = vsel %vm536, 1, 0
        %v538 = vadd.s32 %v534, %v530
        %v539 = vadd.s32 %v535, %v537
        %v540 = vadd.s32 %v539, %v529
        %v541 = vadd.s32 %v540, %v531
        %v542 = vand.u32 %v519, 65535
        %v543 = vshrl.u32 %v519, 16
        %v544 = vand.u32 %v514, 65535
        %v545 = vshrl.u32 %v514, 16
        %v546 = vmul.u32 %v542, %v544
        %v547 = vmul.u32 %v542, %v545
        %v548 = vmul.u32 %v543, %v544
        %v549 = vmul.u32 %v543, %v545
        %v550 = vshll.u32 %v547, 16
        %v551 = vshrl.u32 %v547, 16
        %v552 = vshll.u32 %v548, 16
        %v553 = vshrl.u32 %v548, 16
        %vm554 = vc.u32 %v546, %v550
        %v555 = vsel %vm554, 1, 0
        %v556 = vadd.s32 %v546, %v550
        %v557 = vadd.s32 %v549, %v555
        %vm558 = vc.u32 %v556, %v552
        %v559 = vsel %vm558, 1, 0
        %v560 = vadd.s32 %v556, %v552
        %v561 = vadd.s32 %v557, %v559
        %v562 = vadd.s32 %v561, %v551
        %v563 = vadd.s32 %v562, %v553
        %v564 = vmul.u32 %v519, %v510
        %v565 = vadd.s32 %v541, %v560
        %vm566 = vc.u32 %v541, %v560
        %v567 = vadd.s32 %v563, 1
        %v568 = vsel %vm566, %v567, %v563
        %v569 = vadd.s32 %v564, %v568
        %v570 = vadd.s32 %v569, 536870912
        %v571 = vshrl.u32 %v570, 30
        %v572 = vshll.u32 %v571, 30
        %v573 = vsub.s32 %v569, %v572
        %vm574 = vcmp.lt.s32.totalorder %v573, 0
        %v575 = vsub.s32 0, %v573
        %v576 = vsel %vm574, %v575, %v573
        %v577 = vclz %v576
        %v578 = vsub.s32 %v577, 2
        %vm579 = vcmp.gt.s32.totalorder 0, %v578
        %v580 = vsel %vm579, 0, %v578
        %v581 = vsub.s32 32, %v580
        %v582 = vshll.u32 %v573, %v580
        %v583 = vshrl.u32 %v565, %v581
        %v584 = vor.u32 %v582, %v583
        %v585 = vsub.s32 4294967266, %v580
        %v586 = vadd.s32 %v585, 127
        %v587 = vshll.u32 %v586, 23
        %v588 = vor.u32 4788187, %v587
        %v589 = vand.u32 2147483647, %v588
        %v591 = vcvt.s32.f32 %v584
        %v592 = vmul.f32 %v591, %v589
        %v593 = vxor.u32 %v592, 2147483648
        %v594 = vsel %vm473, %v593, %v592
        %v595 = vsub.s32 4, %v571
        %v596 = vsel %vm473, %v595, %v571
        %v597 = vsel %vm472, %v323, %v594
        %v598 = vsel %vm472, 0, %v596
        %v599 = vmul.f32 %v597, %v597
        %v600 = vmul.f32 %v599, -0.001358992
        %v601 = vadd.f32 %v600, 0.041655596
        %v602 = vmul.f32 %v599, %v601
        %v603 = vadd.f32 %v602, -0.4999988
        %v604 = vmul.f32 %v599, %v603
        %v605 = vadd.f32 1.0, %v604
        %v606 = vmul.f32 %v597, %v597
        %v607 = vmul.f32 %v606, -0.00019511016
        %v608 = vadd.f32 %v607, 0.008332121
        %v609 = vmul.f32 %v606, %v608
        %v610 = vadd.f32 %v609, -0.16666654
        %v611 = vmul.f32 %v606, %v610
        %v612 = vadd.f32 %v611, 1.0
        %v613 = vmul.f32 %v612, %v597
        %vm614 = vweird.f32 %v323
        %v615 = vadd.s32 %v598, 3
        %v616 = vand.u32 %v615, 3
        %vm617 = vcmp.lt.s32.totalorder %v616, 2
        %vm618 = vcmp.eq.s32.totalorder %v616, 0
        %v619 = vxor.u32 %v613, 2147483648
        %v620 = vsel %vm618, %v605, %v619
        %vm621 = vcmp.eq.s32.totalorder %v616, 2
        %v622 = vxor.u32 %v605, 2147483648
        %v623 = vsel %vm621, %v622, %v613
        %v624 = vsel %vm617, %v620, %v623
        %v625 = vsel %vm614, nan, %v624
        %v626 = vand.u32 2147483647, %v469
        %vm627 = vcmp.le.f32.partialorder %v626, 0.7853982
        %vm628 = vcmp.lt.s32.totalorder %v469, 0
        %v629 = vand.u32 %v469, 2139095040
        %v630 = vshrl.u32 %v629, 23
        %v631 = vsub.s32 %v630, 127
        %v632 = vand.u32 2147483647, %v469
        %v633 = vand.u32 %v632, 8388607
        %v634 = vor.u32 %v633, 8388608
        %v635 = vsub.s32 0, %v634
        %v636 = vadd.s32 %v631, 1
        %vm637 = vcmp.gt.s32.totalorder %v636, 0
        %v638 = vsel %vm637, %v636, 0
        %v639 = vshrl.u32 %v638, 5
        %v640 = vand.u32 %v638, 31
        %v641 = vsub.s32 32, %v640
        %v642 = vshrl.u32 683565275, %v641
        %v643 = vshll.u32 683565275, %v640
        %v644 = vshrl.u32 2475754826, %v641
        %v645 = vor.u32 %v643, %v644
        %v646 = vshll.u32 2475754826, %v640
        %v647 = vshrl.u32 2131351028, %v641
        %v648 = vor.u32 %v646, %v647
        %v649 = vshll.u32 2131351028, %v640
        %v650 = vshrl.u32 2102212464, %v641
        %v651 = vor.u32 %v649, %v650
        %v652 = vshll.u32 2102212464, %v640
        %v653 = vshrl.u32 920167782, %v641
        %v654 = vor.u32 %v652, %v653
        %v655 = vshll.u32 920167782, %v640
        %v656 = vshrl.u32 1326507024, %v641
        %v657 = vor.u32 %v655, %v656
        %vm658 = vcmp.lt.s32.totalorder %v639, 1
        %vm659 = vcmp.lt.s32.totalorder %v639, 2
        %vm660 = vcmp.lt.s32.totalorder %v639, 3
        %vm661 = vcmp.lt.s32.totalorder %v639, 4
        %v662 = vsel %vm658, %v642, %v645
        %v663 = vsel %vm661, %v651, 2102212464
        %v664 = vsel %vm660, %v648, %v663
        %v665 = vsel %vm659, %v662, %v664
        %v666 = vsel %vm658, %v645, %v648
        %v667 = vsel %vm661, %v654, 920167782
        %v668 = vsel %vm660, %v651, %v667
        %v669 = vsel %vm659, %v666, %v668
        %v670 = vsel %vm658, %v648, %v651
        %v671 = vsel %vm661, %v657, 1326507024
        %v672 = vsel %vm660, %v654, %v671
        %v673 = vsel %vm659, %v670, %v672
        %v674 = vshll.u32 %v634, 8
        %v675 = vand.u32 %v674, 65535
        %v676 = vshrl.u32 %v674, 16
        %v677 = vand.u32 %v673, 65535
        %v678 = vshrl.u32 %v673, 16
        %v679 = vmul.u32 %v675, %v677
        %v680 = vmul.u32 %v675, %v678
        %v681 = vmul.u32 %v676, %v677
        %v682 = vmul.u32 %v676, %v678
        %v683 = vshll.u32 %v680, 16
        %v684 = vshrl.u32 %v680, 16
        %v685 = vshll.u32 %v681, 16
        %v686 = vshrl.u32 %v681, 16
        %vm687 = vc.u32 %v679, %v683
        %v688 = vsel %vm687, 1, 0
        %v689 = vadd.s32 %v679, %v683
        %v690 = vadd.s32 %v682, %v688
        %vm691 = vc.u32 %v689, %v685
        %v692 = vsel %vm691, 1, 0
        %v693 = vadd.s32 %v689, %v685
        %v694 = vadd.s32 %v690, %v692
        %v695 = vadd.s32 %v694, %v684
        %v696 = vadd.s32 %v695, %v686
        %v697 = vand.u32 %v674, 65535
        %v698 = vshrl.u32 %v674, 16
        %v699 = vand.u32 %v669, 65535
        %v700 = vshrl.u32 %v669, 16
        %v701 = vmul.u32 %v697, %v699
        %v702 = vmul.u32 %v697, %v700
        %v703 = vmul.u32 %v698, %v699
        %v704 = vmul.u32 %v698, %v700
        %v705 = vshll.u32 %v702, 16
        %v706 = vshrl.u32 %v702, 16
        %v707 = vshll.u32 %v703, 16
        %v708 = vshrl.u32 %v703, 16
        %vm709 = vc.u32 %v701, %v705
        %v710 = vsel %vm709, 1, 0
        %v711 = vadd.s32 %v701, %v705
        %v712 = vadd.s32 %v704, %v710
        %vm713 = vc.u32 %v711, %v707
        %v714 = vsel %vm713, 1, 0
        %v715 = vadd.s32 %v711, %v707
        %v716 = vadd.s32 %v712, %v714
        %v717 = vadd.s32 %v716, %v706
        %v718 = vadd.s32 %v717, %v708
        %v719 = vmul.u32 %v674, %v665
        %v720 = vadd.s32 %v696, %v715
        %vm721 = vc.u32 %v696, %v715
        %v722 = vadd.s32 %v718, 1
        %v723 = vsel %vm721, %v722, %v718
        %v724 = vadd.s32 %v719, %v723
        %v725 = vadd.s32 %v724, 536870912
        %v726 = vshrl.u32 %v725, 30
        %v727 = vshll.u32 %v726, 30
        %v728 = vsub.s32 %v724, %v727
        %vm729 = vcmp.lt.s32.totalorder %v728, 0
        %v730 = vsub.s32 0, %v728
        %v731 = vsel %vm729, %v730, %v728
        %v732 = vclz %v731
        %v733 = vsub.s32 %v732, 2
        %vm734 = vcmp.gt.s32.totalorder 0, %v733
        %v735 = vsel %vm734, 0, %v733
        %v736 = vsub.s32 32, %v735
        %v737 = vshll.u32 %v728, %v735
        %v738 = vshrl.u32 %v720, %v736
        %v739 = vor.u32 %v737, %v738
        %v740 = vsub.s32 4294967266, %v735
        %v741 = vadd.s32 %v740, 127
        %v742 = vshll.u32 %v741, 23
        %v743 = vor.u32 4788187, %v742
        %v744 = vand.u32 2147483647, %v743
        %v746 = vcvt.s32.f32 %v739
        %v747 = vmul.f32 %v746, %v744
        %v748 = vxor.u32 %v747, 2147483648
        %v749 = vsel %vm628, %v748, %v747
        %v750 = vsub.s32 4, %v726
        %v751 = vsel %vm628, %v750, %v726
        %v752 = vsel %vm627, %v469, %v749
        %v753 = vsel %vm627, 0, %v751
        %v754 = vmul.f32 %v752, %v752
        %v755 = vmul.f32 %v754, -0.001358992
        %v756 = vadd.f32 %v755, 0.041655596
        %v757 = vmul.f32 %v754, %v756
        %v758 = vadd.f32 %v757, -0.4999988
        %v759 = vmul.f32 %v754, %v758
        %v760 = vadd.f32 1.0, %v759
        %v761 = vmul.f32 %v752, %v752
        %v762 = vmul.f32 %v761, -0.00019511016
        %v763 = vadd.f32 %v762, 0.008332121
        %v764 = vmul.f32 %v761, %v763
        %v765 = vadd.f32 %v764, -0.16666654
        %v766 = vmul.f32 %v761, %v765
        %v767 = vadd.f32 %v766, 1.0
        %v768 = vmul.f32 %v767, %v752
        %vm769 = vweird.f32 %v469
        %v770 = vadd.s32 %v753, 3
        %v771 = vand.u32 %v770, 3
        %vm772 = vcmp.lt.s32.totalorder %v771, 2
        %vm773 = vcmp.eq.s32.totalorder %v771, 0
        %v774 = vxor.u32 %v768, 2147483648
        %v775 = vsel %vm773, %v760, %v774
        %vm776 = vcmp.eq.s32.totalorder %v771, 2
        %v777 = vxor.u32 %v760, 2147483648
        %v778 = vsel %vm776, %v777, %v768
        %v779 = vsel %vm772, %v775, %v778
        %v780 = vsel %vm769, nan, %v779
        %781 = vst [vmem:[%s161] sm:$0xff] %v625
        %782 = vst [vmem:[%s161 + $0x8] sm:$0xff] %v780
        %s783 = sand.u32 %s93, 1
        %s784 = scalar_lea.sflag [#allocation3], %s783
        %s785 = sand.u32 %s93, 1
        %s786 = smul.addr %s785, 16
        %s787 = scalar_lea.vmem [#allocation2], %s786
        // Predicated region
        $region33: #{tpu_custom_call.1} parent=31 // pred_check
          %p788 = pneg %p103
        $region34: #{tpu_custom_call.1} parent=31 // pred_check_branch
          %790 = sbr.rel (%p788) target = $region36
        $region35: #{tpu_custom_call.1} parent=31 // pred_region
          %792 = vsyncadd %s784, 0
          %s793 = smul.addr %s17, 2
          %s794 = smul.addr %s793, 8
          %s795 = scalar_lea.hbm %s3, %s794
          %s797 = sshll.u32 %s787, 4
          %s798 = int_to_ptr.vmem [resolvable:$true] %s797
          %s799 = sshll.u32 %s795, 4
          %s800 = int_to_ptr.hbm [resolvable:$true] %s799
          %802 = dma.vmem_to_hbm [thread:$0]  %s798, 256, %s800, %s784
        $region36: #{tpu_custom_call.1} parent=31 // pred_fallthru
          _
      $region32: #{tpu_custom_call.1} parent=5 // pred_fallthru
        _
      %p803 = scmp.le.s32.totalorder 2, %s12
      // Predicated region
      $region37: #{tpu_custom_call.1} parent=5 // pred_check
        %p804 = pneg %p803
      $region38: #{tpu_custom_call.1} parent=5 // pred_check_branch
        %806 = sbr.rel (%p804) target = $region40
      $region39: #{tpu_custom_call.1} parent=5 // pred_region
        %s807 = ssub.s32 %s12, 2
        // Predicated region
        $region41: #{tpu_custom_call.1} parent=39 // pred_check
          %p808 = pneg %p109
        $region42: #{tpu_custom_call.1} parent=39 // pred_check_branch
          %810 = sbr.rel (%p808) target = $region44
        $region43: #{tpu_custom_call.1} parent=39 // pred_region
          %s811 = sand.u32 %s94, 1
          %s812 = scalar_lea.sflag [#allocation3], %s811
          %s813 = sand.u32 %s94, 1
          %s814 = smul.addr %s813, 16
          %s815 = scalar_lea.vmem [#allocation2], %s814
          %817 = dma.done %s812, 256
        $region44: #{tpu_custom_call.1} parent=39 // pred_fallthru
          _
      $region40: #{tpu_custom_call.1} parent=5 // pred_fallthru
        _
    $region6: #{tpu_custom_call.1} parent=1 // loop_footer
      %s16 = sadd.s32 1, %s12
    $region7: #{tpu_custom_call.1} parent=1 // loop_footer_branch
      %11 = sbr.rel target = $region3
    $region8: #{tpu_custom_call.1} parent=1 // loop_exit
      _
    %818 = vsyncpa [#allocation3], 1
    %s819 = scalar_lea.sflag [#allocation3], 1
    %820 = vsyncpa %s819, 1

</llo_original>
